<compile_context>
chip_gen: v7x
topology: tpu7x:2x2x1
jax: 0.10.0
libtpu: 0.0.40
codegen_flags: <defaults>
</compile_context>

<pallas_src>
import functools

import jax
import jax.numpy as jnp
from jax import lax
from jax.experimental import pallas as pl
from jax.experimental.pallas import tpu as pltpu


def _spatial_attention_kernel(x_ref, w_ref, m_ref, o_ref, avgp_ref, maxp_ref, *,
                              W, pad, mean_on_mxu):
    # x_ref   : (BBLK, C, H*W)  input block (lane-dense last axis), VMEM
    # w_ref   : (18,)           conv weight in SMEM, layout [in_ch: 0=avg, 1=max][kh][kw]
    # m_ref   : (2, 1, H*W)     column masks f32: [0]=left-neighbour valid, [1]=right valid
    # o_ref   : (BBLK, C, H*W)  output block, VMEM
    # avgp_ref/maxp_ref : (BBLK, 1, H*W + 2*pad) f32 VMEM scratch (halo'd pooled maps)
    bblk, C, HW = x_ref.shape

    # --- channel-wise mean / max pooling (torch.mean / torch.max over dim=1) ---
    if mean_on_mxu:
        # bf16 path: offload the C-length sum to the otherwise-idle MXU
        # (batched (1,C)@(C,HW) with f32 accumulation) to relieve the binding VALU.
        ones_b = jnp.ones((bblk, 1, C), x_ref.dtype)
        avg = lax.dot_general(
            ones_b, x_ref[...],
            dimension_numbers=(((2,), (1,)), ((0,), (0,))),
            preferred_element_type=jnp.float32) * (1.0 / C)            # (bblk,1,HW) f32
    else:
        # f32 inputs are HBM-bound; VPU sum with f32 accumulation, no full-block temp.
        avg = jnp.sum(x_ref[...], axis=1, keepdims=True, dtype=jnp.float32) * (1.0 / C)
    # max is exact in the input dtype -> no full-block f32 cast with two consumers.
    mx = jnp.max(x_ref[...], axis=1, keepdims=True).astype(jnp.float32)  # (bblk,1,HW)

    # --- pooled maps into halo'd scratch (emulates Conv2d padding=1) ---
    # Only the halo lanes are zeroed (interior fully overwritten each step).  Re-zero
    # every step: scratch is per-core under megacore, so a program_id==0 guard is unsafe.
    zhalo = jnp.zeros((bblk, 1, pad), jnp.float32)
    avgp_ref[:, :, 0:pad] = zhalo
    avgp_ref[:, :, pad + HW:pad + HW + pad] = zhalo
    maxp_ref[:, :, 0:pad] = zhalo
    maxp_ref[:, :, pad + HW:pad + HW + pad] = zhalo
    avgp_ref[:, :, pad:pad + HW] = avg
    maxp_ref[:, :, pad:pad + HW] = mx

    left_ok = m_ref[0:1, :, :]      # (1, 1, HW): column j has a j-1 neighbour
    right_ok = m_ref[1:2, :, :]     # (1, 1, HW): column j has a j+1 neighbour

    # --- 3x3 conv over the 2-channel [avg, max] map (9 taps, fused avg/max FMA) ---
    acc = jnp.zeros((bblk, 1, HW), jnp.float32)
    for dw in (-1, 0, 1):
        part = jnp.zeros((bblk, 1, HW), jnp.float32)
        for dh in (-1, 0, 1):
            off = pad + dh * W + dw
            kh, kw = dh + 1, dw + 1
            w_avg = w_ref[kh * 3 + kw]          # scalar from SMEM
            w_max = w_ref[9 + kh * 3 + kw]
            part = (part
                    + w_avg * avgp_ref[:, :, off:off + HW]
                    + w_max * maxp_ref[:, :, off:off + HW])
        if dw == -1:
            part = part * left_ok
        elif dw == 1:
            part = part * right_ok
        acc = acc + part

    # Attention map is tiny -> downcast once; rescale in the I/O dtype so the bf16
    # path has no per-element up/downcast of the C*HW block.
    attn = jax.nn.sigmoid(acc).astype(o_ref.dtype)                 # (bblk, 1, HW)
    o_ref[...] = x_ref[...] * attn


def _default_vmem_limit_bytes():
    """Scoped-VMEM limit sized from physical VMEM (v5e/v6e 128 MiB, v7x 64 MiB/TC)."""
    try:
        cap = int(pltpu.get_tpu_info().vmem_capacity_bytes)
    except Exception:
        cap = 64 * 1024 * 1024          # conservative fallback (v7x per-TC VMEM)
    return max(16 * 1024 * 1024, cap // 2)   # leave half for Mosaic internal scratch


_MXU_MEAN_OK = True   # flipped off once if this Mosaic rejects the tiny-M batched dot


def spatial_attention(x, conv_weight, *, block_batch=None):
    """x: (B, C, H, W) NCHW (f32 or bf16); conv_weight: (1, 2, 3, 3) as nn.Conv2d(2,1,3,bias=False)."""
    global _MXU_MEAN_OK
    B, C, H, W = x.shape
    HW = H * W
    pad = W + 1  # flat halo large enough for any of the 9 taps (|dh*W + dw| <= W+1)

    # Free layout glue: flatten spatial dims so the last axis is lane-dense.
    x_flat = x.reshape(B, C, HW)
    w_flat = conv_weight.reshape(-1).astype(jnp.float32)       # (18,) OIHW -> [i][kh][kw]

    # Precomputed column masks (tiny constant input) correcting the row-wrap of the
    # +/-1 lane shifts.  (Review: dropping this operand is optional/minor; kept for a
    # guaranteed-clean lowering and one fewer in-kernel integer-op pattern.)
    col = jnp.arange(HW, dtype=jnp.int32) % W
    left_ok = (col >= 1).astype(jnp.float32)
    right_ok = (col <= W - 2).astype(jnp.float32)
    col_masks = jnp.stack([left_ok, right_ok], axis=0).reshape(2, 1, HW)

    # --- VMEM budgeting: 2x in + 2x out pipeline buffers = 4x block bytes; in-kernel
    # f32 temps are only O(HW) now, so they are negligible.
    vmem_limit = _default_vmem_limit_bytes()
    block_budget = min(8 * 1024 * 1024,                           # ~8 MiB on v5e/v6e
                       max(1 * 1024 * 1024,
                           (vmem_limit - 2 * 1024 * 1024) // 4))  # ~7.5 MiB on v7x

    if block_batch is None:
        bytes_per_batch = C * HW * jnp.dtype(x.dtype).itemsize
        bblk = max(1, min(B, block_budget // max(bytes_per_batch, 1)))
        if B >= 2:
            bblk = min(bblk, B // 2)   # >= 2 grid steps so both v7x TensorCores get work
        while B % bblk:
            bblk -= 1
    else:
        assert B % block_batch == 0, "block_batch must divide B"
        bblk = block_batch

    grid = (B // bblk,)

    def _call(mean_on_mxu):
        kernel = functools.partial(_spatial_attention_kernel, W=W, pad=pad,
                                   mean_on_mxu=mean_on_mxu)
        return pl.pallas_call(
            kernel,
            out_shape=jax.ShapeDtypeStruct((B, C, HW), x.dtype),
            grid_spec=pltpu.PrefetchScalarGridSpec(
                num_scalar_prefetch=0,
                grid=grid,
                in_specs=[
                    pl.BlockSpec((bblk, C, HW), lambda b: (b, 0, 0)),
                    pl.BlockSpec(memory_space=pltpu.MemorySpace.SMEM),
                    pl.BlockSpec((2, 1, HW), lambda b: (0, 0, 0)),
                ],
                out_specs=pl.BlockSpec((bblk, C, HW), lambda b: (b, 0, 0)),
                scratch_shapes=[
                    pltpu.VMEM((bblk, 1, HW + 2 * pad), jnp.float32),
                    pltpu.VMEM((bblk, 1, HW + 2 * pad), jnp.float32),
                ],
            ),
            compiler_params=pltpu.CompilerParams(
                dimension_semantics=("parallel",),
                vmem_limit_bytes=vmem_limit),
        )(x_flat, w_flat, col_masks)

    want_mxu = (x.dtype == jnp.bfloat16)   # MXU mean pays off on v7x/v6e bf16
    if want_mxu and _MXU_MEAN_OK:
        try:
            out_flat = _call(True)
        except Exception:
            _MXU_MEAN_OK = False          # graceful fallback to the VPU-sum variant
            out_flat = _call(False)
    else:
        out_flat = _call(False)
    return out_flat.reshape(B, C, H, W)


def _reference(x, conv_weight):
    avg = jnp.mean(x, axis=1, keepdims=True)
    mx = jnp.max(x, axis=1, keepdims=True)
    cat = jnp.concatenate([avg, mx], axis=1)
    conv = lax.conv_general_dilated(
        cat, conv_weight, window_strides=(1, 1), padding="SAME",
        dimension_numbers=("NCHW", "OIHW", "NCHW"))
    return x * jax.nn.sigmoid(conv)


if __name__ == "__main__":
    key = jax.random.PRNGKey(0)
    kx, kw = jax.random.split(key)

    B, C, H, W = 2, 4, 16, 16
    x = jax.random.normal(kx, (B, C, H, W), dtype=jnp.float32)

    # Deterministic init mimicking nn.Conv2d(2, 1, 3, bias=False):
    # kaiming-uniform(a=sqrt(5)) -> U(-1/sqrt(fan_in), 1/sqrt(fan_in)), fan_in = 2*3*3.
    fan_in = 2 * 3 * 3
    bound = 1.0 / (fan_in ** 0.5)
    conv_w = jax.random.uniform(kw, (1, 2, 3, 3), jnp.float32, -bound, bound)

    ref = _reference(x, conv_w)

    # f32, default tiling (bblk capped to B//2 -> 2 "parallel" grid steps).
    out = jax.block_until_ready(spatial_attention(x, conv_w))
    assert out.shape == (B, C, H, W) and out.dtype == x.dtype
    err = float(jnp.max(jnp.abs(out - ref)))
    assert err < 1e-4, f"f32 mismatch vs reference: {err}"

    # f32, explicit block_batch (same 2-step grid, exercises the explicit path).
    out2 = jax.block_until_ready(spatial_attention(x, conv_w, block_batch=1))
    err2 = float(jnp.max(jnp.abs(out2 - ref)))
    assert err2 < 1e-4, f"grid>1 mismatch vs reference: {err2}"

    # bf16 I/O path (halves HBM traffic; MXU mean + bf16 rescale inside the kernel).
    xb = x.astype(jnp.bfloat16)
    outb = jax.block_until_ready(spatial_attention(xb, conv_w))
    assert outb.dtype == jnp.bfloat16
    refb = _reference(xb.astype(jnp.float32), conv_w)
    errb = float(jnp.max(jnp.abs(outb.astype(jnp.float32) - refb)))
    assert errb < 1e-1, f"bf16 mismatch vs reference: {errb}"

    print("KERNEL_OK")
</pallas_src>

<mosaic_0001>
module attributes {stable_mosaic.version = 11 : i64} {
  func.func @_spatial_attention_kernel(%arg0: i32, %arg1: memref<1x4x256xf32, #tpu.memory_space<vmem>>, %arg2: memref<18xf32, #tpu.memory_space<smem>>, %arg3: memref<2x1x256xf32, #tpu.memory_space<vmem>>, %arg4: memref<1x4x256xf32, #tpu.memory_space<vmem>>, %arg5: memref<1x1x290xf32, #tpu.memory_space<vmem>>, %arg6: memref<1x1x290xf32, #tpu.memory_space<vmem>>) attributes {dimension_semantics = [#tpu.dimension_semantics<parallel>], iteration_bounds = array<i64: 2>, scalar_prefetch = 0 : i64, scratch_operands = 2 : i64, tpu.core_type = #tpu.core_type<tc>, window_params = [{transform_indices = @transform_0, window_bounds = array<i64: 1, 4, 256>}, {transform_indices = @transform_1, window_bounds = array<i64: 18>}, {pipeline_mode = #tpu.pipeline_mode<synchronous>, transform_indices = @transform_2, window_bounds = array<i64: 2, 1, 256>}, {transform_indices = @transform_3, window_bounds = array<i64: 1, 4, 256>}]} {
    %c0 = arith.constant 0 : index
    %c0_0 = arith.constant 0 : index
    %c0_1 = arith.constant 0 : index
    %0 = vector.load %arg1[%c0, %c0_0, %c0_1] : memref<1x4x256xf32, #tpu.memory_space<vmem>>, vector<1x4x256xf32>
    %cst = arith.constant dense<0.000000e+00> : vector<1x256xf32>
    %1 = vector.multi_reduction <add>, %0, %cst [1] : vector<1x4x256xf32> to vector<1x256xf32>
    %2 = vector.shape_cast %1 : vector<1x256xf32> to vector<1x1x256xf32>
    %cst_2 = arith.constant 2.500000e-01 : f32
    %3 = vector.broadcast %cst_2 : f32 to vector<1x1x256xf32>
    %4 = arith.mulf %2, %3 : vector<1x1x256xf32>
    %c0_3 = arith.constant 0 : index
    %c0_4 = arith.constant 0 : index
    %c0_5 = arith.constant 0 : index
    %5 = vector.load %arg1[%c0_3, %c0_4, %c0_5] : memref<1x4x256xf32, #tpu.memory_space<vmem>>, vector<1x4x256xf32>
    %cst_6 = arith.constant dense<0xFF800000> : vector<1x256xf32>
    %6 = vector.multi_reduction <maximumf>, %5, %cst_6 [1] : vector<1x4x256xf32> to vector<1x256xf32>
    %7 = vector.shape_cast %6 : vector<1x256xf32> to vector<1x1x256xf32>
    %cst_7 = arith.constant 0.000000e+00 : f32
    %8 = vector.broadcast %cst_7 : f32 to vector<1x1x17xf32>
    %c0_8 = arith.constant 0 : index
    %c0_9 = arith.constant 0 : index
    %c0_10 = arith.constant 0 : index
    %9 = vector.load %arg5[%c0_8, %c0_9, %c0_10] : memref<1x1x290xf32, #tpu.memory_space<vmem>>, vector<1x1x17xf32>
    tpu.vector_store %arg5[%c0_8, %c0_9, %c0_10], %8 {strides = array<i32>} : memref<1x1x290xf32, #tpu.memory_space<vmem>>, vector<1x1x17xf32>,
    %c0_11 = arith.constant 0 : index
    %c0_12 = arith.constant 0 : index
    %c273 = arith.constant 273 : index
    %10 = vector.load %arg5[%c0_11, %c0_12, %c273] : memref<1x1x290xf32, #tpu.memory_space<vmem>>, vector<1x1x17xf32>
    tpu.vector_store %arg5[%c0_11, %c0_12, %c273], %8 {strides = array<i32>} : memref<1x1x290xf32, #tpu.memory_space<vmem>>, vector<1x1x17xf32>,
    %c0_13 = arith.constant 0 : index
    %c0_14 = arith.constant 0 : index
    %c0_15 = arith.constant 0 : index
    %11 = vector.load %arg6[%c0_13, %c0_14, %c0_15] : memref<1x1x290xf32, #tpu.memory_space<vmem>>, vector<1x1x17xf32>
    tpu.vector_store %arg6[%c0_13, %c0_14, %c0_15], %8 {strides = array<i32>} : memref<1x1x290xf32, #tpu.memory_space<vmem>>, vector<1x1x17xf32>,
    %c0_16 = arith.constant 0 : index
    %c0_17 = arith.constant 0 : index
    %c273_18 = arith.constant 273 : index
    %12 = vector.load %arg6[%c0_16, %c0_17, %c273_18] : memref<1x1x290xf32, #tpu.memory_space<vmem>>, vector<1x1x17xf32>
    tpu.vector_store %arg6[%c0_16, %c0_17, %c273_18], %8 {strides = array<i32>} : memref<1x1x290xf32, #tpu.memory_space<vmem>>, vector<1x1x17xf32>,
    %c0_19 = arith.constant 0 : index
    %c0_20 = arith.constant 0 : index
    %c17 = arith.constant 17 : index
    %13 = vector.load %arg5[%c0_19, %c0_20, %c17] : memref<1x1x290xf32, #tpu.memory_space<vmem>>, vector<1x1x256xf32>
    tpu.vector_store %arg5[%c0_19, %c0_20, %c17], %4 {strides = array<i32>} : memref<1x1x290xf32, #tpu.memory_space<vmem>>, vector<1x1x256xf32>,
    %c0_21 = arith.constant 0 : index
    %c0_22 = arith.constant 0 : index
    %c17_23 = arith.constant 17 : index
    %14 = vector.load %arg6[%c0_21, %c0_22, %c17_23] : memref<1x1x290xf32, #tpu.memory_space<vmem>>, vector<1x1x256xf32>
    tpu.vector_store %arg6[%c0_21, %c0_22, %c17_23], %7 {strides = array<i32>} : memref<1x1x290xf32, #tpu.memory_space<vmem>>, vector<1x1x256xf32>,
    %c0_24 = arith.constant 0 : index
    %c0_25 = arith.constant 0 : index
    %c0_26 = arith.constant 0 : index
    %15 = vector.load %arg3[%c0_24, %c0_25, %c0_26] : memref<2x1x256xf32, #tpu.memory_space<vmem>>, vector<1x1x256xf32>
    %c1 = arith.constant 1 : index
    %c0_27 = arith.constant 0 : index
    %c0_28 = arith.constant 0 : index
    %16 = vector.load %arg3[%c1, %c0_27, %c0_28] : memref<2x1x256xf32, #tpu.memory_space<vmem>>, vector<1x1x256xf32>
    %cst_29 = arith.constant 0.000000e+00 : f32
    %17 = vector.broadcast %cst_29 : f32 to vector<1x1x256xf32>
    %cst_30 = arith.constant 0.000000e+00 : f32
    %18 = vector.broadcast %cst_30 : f32 to vector<1x1x256xf32>
    %c0_31 = arith.constant 0 : index
    %19 = memref.load %arg2[%c0_31] : memref<18xf32, #tpu.memory_space<smem>>
    %c9 = arith.constant 9 : index
    %20 = memref.load %arg2[%c9] : memref<18xf32, #tpu.memory_space<smem>>
    %c0_32 = arith.constant 0 : index
    %c0_33 = arith.constant 0 : index
    %c0_34 = arith.constant 0 : index
    %21 = vector.load %arg5[%c0_32, %c0_33, %c0_34] : memref<1x1x290xf32, #tpu.memory_space<vmem>>, vector<1x1x256xf32>
    %22 = vector.broadcast %19 : f32 to vector<1x1x256xf32>
    %23 = arith.mulf %22, %21 : vector<1x1x256xf32>
    %24 = arith.addf %18, %23 : vector<1x1x256xf32>
    %c0_35 = arith.constant 0 : index
    %c0_36 = arith.constant 0 : index
    %c0_37 = arith.constant 0 : index
    %25 = vector.load %arg6[%c0_35, %c0_36, %c0_37] : memref<1x1x290xf32, #tpu.memory_space<vmem>>, vector<1x1x256xf32>
    %26 = vector.broadcast %20 : f32 to vector<1x1x256xf32>
    %27 = arith.mulf %26, %25 : vector<1x1x256xf32>
    %28 = arith.addf %24, %27 : vector<1x1x256xf32>
    %c3 = arith.constant 3 : index
    %29 = memref.load %arg2[%c3] : memref<18xf32, #tpu.memory_space<smem>>
    %c12 = arith.constant 12 : index
    %30 = memref.load %arg2[%c12] : memref<18xf32, #tpu.memory_space<smem>>
    %c0_38 = arith.constant 0 : index
    %c0_39 = arith.constant 0 : index
    %c16 = arith.constant 16 : index
    %31 = vector.load %arg5[%c0_38, %c0_39, %c16] : memref<1x1x290xf32, #tpu.memory_space<vmem>>, vector<1x1x256xf32>
    %32 = vector.broadcast %29 : f32 to vector<1x1x256xf32>
    %33 = arith.mulf %32, %31 : vector<1x1x256xf32>
    %34 = arith.addf %28, %33 : vector<1x1x256xf32>
    %c0_40 = arith.constant 0 : index
    %c0_41 = arith.constant 0 : index
    %c16_42 = arith.constant 16 : index
    %35 = vector.load %arg6[%c0_40, %c0_41, %c16_42] : memref<1x1x290xf32, #tpu.memory_space<vmem>>, vector<1x1x256xf32>
    %36 = vector.broadcast %30 : f32 to vector<1x1x256xf32>
    %37 = arith.mulf %36, %35 : vector<1x1x256xf32>
    %38 = arith.addf %34, %37 : vector<1x1x256xf32>
    %c6 = arith.constant 6 : index
    %39 = memref.load %arg2[%c6] : memref<18xf32, #tpu.memory_space<smem>>
    %c15 = arith.constant 15 : index
    %40 = memref.load %arg2[%c15] : memref<18xf32, #tpu.memory_space<smem>>
    %c0_43 = arith.constant 0 : index
    %c0_44 = arith.constant 0 : index
    %c32 = arith.constant 32 : index
    %41 = vector.load %arg5[%c0_43, %c0_44, %c32] : memref<1x1x290xf32, #tpu.memory_space<vmem>>, vector<1x1x256xf32>
    %42 = vector.broadcast %39 : f32 to vector<1x1x256xf32>
    %43 = arith.mulf %42, %41 : vector<1x1x256xf32>
    %44 = arith.addf %38, %43 : vector<1x1x256xf32>
    %c0_45 = arith.constant 0 : index
    %c0_46 = arith.constant 0 : index
    %c32_47 = arith.constant 32 : index
    %45 = vector.load %arg6[%c0_45, %c0_46, %c32_47] : memref<1x1x290xf32, #tpu.memory_space<vmem>>, vector<1x1x256xf32>
    %46 = vector.broadcast %40 : f32 to vector<1x1x256xf32>
    %47 = arith.mulf %46, %45 : vector<1x1x256xf32>
    %48 = arith.addf %44, %47 : vector<1x1x256xf32>
    %49 = arith.mulf %48, %15 : vector<1x1x256xf32>
    %50 = arith.addf %17, %49 : vector<1x1x256xf32>
    %cst_48 = arith.constant 0.000000e+00 : f32
    %51 = vector.broadcast %cst_48 : f32 to vector<1x1x256xf32>
    %c1_49 = arith.constant 1 : index
    %52 = memref.load %arg2[%c1_49] : memref<18xf32, #tpu.memory_space<smem>>
    %c10 = arith.constant 10 : index
    %53 = memref.load %arg2[%c10] : memref<18xf32, #tpu.memory_space<smem>>
    %c0_50 = arith.constant 0 : index
    %c0_51 = arith.constant 0 : index
    %c1_52 = arith.constant 1 : index
    %54 = vector.load %arg5[%c0_50, %c0_51, %c1_52] : memref<1x1x290xf32, #tpu.memory_space<vmem>>, vector<1x1x256xf32>
    %55 = vector.broadcast %52 : f32 to vector<1x1x256xf32>
    %56 = arith.mulf %55, %54 : vector<1x1x256xf32>
    %57 = arith.addf %51, %56 : vector<1x1x256xf32>
    %c0_53 = arith.constant 0 : index
    %c0_54 = arith.constant 0 : index
    %c1_55 = arith.constant 1 : index
    %58 = vector.load %arg6[%c0_53, %c0_54, %c1_55] : memref<1x1x290xf32, #tpu.memory_space<vmem>>, vector<1x1x256xf32>
    %59 = vector.broadcast %53 : f32 to vector<1x1x256xf32>
    %60 = arith.mulf %59, %58 : vector<1x1x256xf32>
    %61 = arith.addf %57, %60 : vector<1x1x256xf32>
    %c4 = arith.constant 4 : index
    %62 = memref.load %arg2[%c4] : memref<18xf32, #tpu.memory_space<smem>>
    %c13 = arith.constant 13 : index
    %63 = memref.load %arg2[%c13] : memref<18xf32, #tpu.memory_space<smem>>
    %c0_56 = arith.constant 0 : index
    %c0_57 = arith.constant 0 : index
    %c17_58 = arith.constant 17 : index
    %64 = vector.load %arg5[%c0_56, %c0_57, %c17_58] : memref<1x1x290xf32, #tpu.memory_space<vmem>>, vector<1x1x256xf32>
    %65 = vector.broadcast %62 : f32 to vector<1x1x256xf32>
    %66 = arith.mulf %65, %64 : vector<1x1x256xf32>
    %67 = arith.addf %61, %66 : vector<1x1x256xf32>
    %c0_59 = arith.constant 0 : index
    %c0_60 = arith.constant 0 : index
    %c17_61 = arith.constant 17 : index
    %68 = vector.load %arg6[%c0_59, %c0_60, %c17_61] : memref<1x1x290xf32, #tpu.memory_space<vmem>>, vector<1x1x256xf32>
    %69 = vector.broadcast %63 : f32 to vector<1x1x256xf32>
    %70 = arith.mulf %69, %68 : vector<1x1x256xf32>
    %71 = arith.addf %67, %70 : vector<1x1x256xf32>
    %c7 = arith.constant 7 : index
    %72 = memref.load %arg2[%c7] : memref<18xf32, #tpu.memory_space<smem>>
    %c16_62 = arith.constant 16 : index
    %73 = memref.load %arg2[%c16_62] : memref<18xf32, #tpu.memory_space<smem>>
    %c0_63 = arith.constant 0 : index
    %c0_64 = arith.constant 0 : index
    %c33 = arith.constant 33 : index
    %74 = vector.load %arg5[%c0_63, %c0_64, %c33] : memref<1x1x290xf32, #tpu.memory_space<vmem>>, vector<1x1x256xf32>
    %75 = vector.broadcast %72 : f32 to vector<1x1x256xf32>
    %76 = arith.mulf %75, %74 : vector<1x1x256xf32>
    %77 = arith.addf %71, %76 : vector<1x1x256xf32>
    %c0_65 = arith.constant 0 : index
    %c0_66 = arith.constant 0 : index
    %c33_67 = arith.constant 33 : index
    %78 = vector.load %arg6[%c0_65, %c0_66, %c33_67] : memref<1x1x290xf32, #tpu.memory_space<vmem>>, vector<1x1x256xf32>
    %79 = vector.broadcast %73 : f32 to vector<1x1x256xf32>
    %80 = arith.mulf %79, %78 : vector<1x1x256xf32>
    %81 = arith.addf %77, %80 : vector<1x1x256xf32>
    %82 = arith.addf %50, %81 : vector<1x1x256xf32>
    %cst_68 = arith.constant 0.000000e+00 : f32
    %83 = vector.broadcast %cst_68 : f32 to vector<1x1x256xf32>
    %c2 = arith.constant 2 : index
    %84 = memref.load %arg2[%c2] : memref<18xf32, #tpu.memory_space<smem>>
    %c11 = arith.constant 11 : index
    %85 = memref.load %arg2[%c11] : memref<18xf32, #tpu.memory_space<smem>>
    %c0_69 = arith.constant 0 : index
    %c0_70 = arith.constant 0 : index
    %c2_71 = arith.constant 2 : index
    %86 = vector.load %arg5[%c0_69, %c0_70, %c2_71] : memref<1x1x290xf32, #tpu.memory_space<vmem>>, vector<1x1x256xf32>
    %87 = vector.broadcast %84 : f32 to vector<1x1x256xf32>
    %88 = arith.mulf %87, %86 : vector<1x1x256xf32>
    %89 = arith.addf %83, %88 : vector<1x1x256xf32>
    %c0_72 = arith.constant 0 : index
    %c0_73 = arith.constant 0 : index
    %c2_74 = arith.constant 2 : index
    %90 = vector.load %arg6[%c0_72, %c0_73, %c2_74] : memref<1x1x290xf32, #tpu.memory_space<vmem>>, vector<1x1x256xf32>
    %91 = vector.broadcast %85 : f32 to vector<1x1x256xf32>
    %92 = arith.mulf %91, %90 : vector<1x1x256xf32>
    %93 = arith.addf %89, %92 : vector<1x1x256xf32>
    %c5 = arith.constant 5 : index
    %94 = memref.load %arg2[%c5] : memref<18xf32, #tpu.memory_space<smem>>
    %c14 = arith.constant 14 : index
    %95 = memref.load %arg2[%c14] : memref<18xf32, #tpu.memory_space<smem>>
    %c0_75 = arith.constant 0 : index
    %c0_76 = arith.constant 0 : index
    %c18 = arith.constant 18 : index
    %96 = vector.load %arg5[%c0_75, %c0_76, %c18] : memref<1x1x290xf32, #tpu.memory_space<vmem>>, vector<1x1x256xf32>
    %97 = vector.broadcast %94 : f32 to vector<1x1x256xf32>
    %98 = arith.mulf %97, %96 : vector<1x1x256xf32>
    %99 = arith.addf %93, %98 : vector<1x1x256xf32>
    %c0_77 = arith.constant 0 : index
    %c0_78 = arith.constant 0 : index
    %c18_79 = arith.constant 18 : index
    %100 = vector.load %arg6[%c0_77, %c0_78, %c18_79] : memref<1x1x290xf32, #tpu.memory_space<vmem>>, vector<1x1x256xf32>
    %101 = vector.broadcast %95 : f32 to vector<1x1x256xf32>
    %102 = arith.mulf %101, %100 : vector<1x1x256xf32>
    %103 = arith.addf %99, %102 : vector<1x1x256xf32>
    %c8 = arith.constant 8 : index
    %104 = memref.load %arg2[%c8] : memref<18xf32, #tpu.memory_space<smem>>
    %c17_80 = arith.constant 17 : index
    %105 = memref.load %arg2[%c17_80] : memref<18xf32, #tpu.memory_space<smem>>
    %c0_81 = arith.constant 0 : index
    %c0_82 = arith.constant 0 : index
    %c34 = arith.constant 34 : index
    %106 = vector.load %arg5[%c0_81, %c0_82, %c34] : memref<1x1x290xf32, #tpu.memory_space<vmem>>, vector<1x1x256xf32>
    %107 = vector.broadcast %104 : f32 to vector<1x1x256xf32>
    %108 = arith.mulf %107, %106 : vector<1x1x256xf32>
    %109 = arith.addf %103, %108 : vector<1x1x256xf32>
    %c0_83 = arith.constant 0 : index
    %c0_84 = arith.constant 0 : index
    %c34_85 = arith.constant 34 : index
    %110 = vector.load %arg6[%c0_83, %c0_84, %c34_85] : memref<1x1x290xf32, #tpu.memory_space<vmem>>, vector<1x1x256xf32>
    %111 = vector.broadcast %105 : f32 to vector<1x1x256xf32>
    %112 = arith.mulf %111, %110 : vector<1x1x256xf32>
    %113 = arith.addf %109, %112 : vector<1x1x256xf32>
    %114 = arith.mulf %113, %16 : vector<1x1x256xf32>
    %115 = arith.addf %82, %114 : vector<1x1x256xf32>
    %116 = arith.negf %115 : vector<1x1x256xf32>
    %117 = math.exp %116 : vector<1x1x256xf32>
    %cst_86 = arith.constant 1.000000e+00 : f32
    %118 = vector.broadcast %cst_86 : f32 to vector<1x1x256xf32>
    %119 = arith.addf %118, %117 : vector<1x1x256xf32>
    %120 = arith.divf %118, %119 : vector<1x1x256xf32>
    %c0_87 = arith.constant 0 : index
    %c0_88 = arith.constant 0 : index
    %c0_89 = arith.constant 0 : index
    %121 = vector.load %arg1[%c0_87, %c0_88, %c0_89] : memref<1x4x256xf32, #tpu.memory_space<vmem>>, vector<1x4x256xf32>
    %122 = vector.broadcast %120 : vector<1x1x256xf32> to vector<1x4x256xf32>
    %123 = arith.mulf %121, %122 : vector<1x4x256xf32>
    %c0_90 = arith.constant 0 : index
    %c0_91 = arith.constant 0 : index
    %c0_92 = arith.constant 0 : index
    %124 = vector.load %arg4[%c0_90, %c0_91, %c0_92] : memref<1x4x256xf32, #tpu.memory_space<vmem>>, vector<1x4x256xf32>
    tpu.vector_store %arg4[%c0_90, %c0_91, %c0_92], %123 {strides = array<i32>} : memref<1x4x256xf32, #tpu.memory_space<vmem>>, vector<1x4x256xf32>,
    return
  }
  func.func @transform_0(%arg0: i32) -> (i32, i32, i32) {
    %c0_i32 = arith.constant 0 : i32
    %c0_i32_0 = arith.constant 0 : i32
    %c0_i32_1 = arith.constant 0 : i32
    return %arg0, %c0_i32, %c0_i32_0 : i32, i32, i32
  }
  func.func @transform_1(%arg0: i32) -> i32 {
    %c0_i32 = arith.constant 0 : i32
    %c0_i32_0 = arith.constant 0 : i32
    return %c0_i32 : i32
  }
  func.func @transform_2(%arg0: i32) -> (i32, i32, i32) {
    %c0_i32 = arith.constant 0 : i32
    %c0_i32_0 = arith.constant 0 : i32
    %c0_i32_1 = arith.constant 0 : i32
    %c0_i32_2 = arith.constant 0 : i32
    return %c0_i32, %c0_i32_0, %c0_i32_1 : i32, i32, i32
  }
  func.func @transform_3(%arg0: i32) -> (i32, i32, i32) {
    %c0_i32 = arith.constant 0 : i32
    %c0_i32_0 = arith.constant 0 : i32
    %c0_i32_1 = arith.constant 0 : i32
    return %arg0, %c0_i32, %c0_i32_0 : i32, i32, i32
  }
}

</mosaic_0001>

<llo_original>
// kernel: tpu_custom_call.1
$region0: #{tpu_custom_call.1}
  #allocation0 [shape = 'u32[]', space=smem, size = 0x4, offset = 0x4, fixed_abs, tag = 'smem constant byte address 0x4 - core index']
  #allocation1 [shape = 'u32[144,128]{1,0:T(1,128)}', space=vmem, size = 0x12000, scoped, tag = 'internal scratch']
  #allocation2 [shape = 'f32[1,1,290]{2,1,0:T(1,128)}', space=vmem, size = 0x600, scoped, tag = 'scratch operand']
  #allocation3 [shape = 'f32[1,1,290]{2,1,0:T(1,128)}', space=vmem, size = 0x600, scoped, tag = 'scratch operand']
  %s0 = inlined_call_operand.hbm [shape: f32[2,4,256], index: 0, kind: input, shape index: {}]
  %s1 = inlined_call_operand.vmem [shape: f32[18], index: 1, kind: input, shape index: {}]
  %s2 = inlined_call_operand.vmem [shape: f32[2,1,256], index: 2, kind: input, shape index: {}]
  %s3 = inlined_call_operand.hbm [shape: f32[2,4,256], index: 3, kind: output, shape index: {}]
  %s4 = sld [smem:[#allocation0]]
  $region53: #{tpu_custom_call.1} parent=0
    _
  %s6 = ssub.s32 1, %s4
  %s7 = scalar_select 0, %s6, %s4
  $region1: #{tpu_custom_call.1} parent=0
    #allocation4 [shape = 'u8[8192]{0}', space=vmem, size = 0x2000, scoped, tag = 'input window, operand 0']
    #allocation5 [shape = 's32[2]{0}', space=sflag, size = 0x8, scoped, tag = 'scoped memory for tpu_custom_call.1']
    #allocation6 [shape = 's32[2]{0}', space=sflag, size = 0x8, scoped, tag = 'scoped memory for tpu_custom_call.1']
    #allocation7 [shape = 's32[2]{0}', space=sflag, size = 0x8, scoped, tag = 'scoped memory for tpu_custom_call.1']
    #allocation8 [shape = 'u8[512]{0}', space=smem, size = 0x200, scoped, tag = 'input window, operand 1, single buffered']
    #allocation9 [shape = 'u8[8192]{0}', space=vmem, size = 0x2000, scoped, tag = 'output window, operand 0']
    %8 = vsyncpa [#allocation5], 0
    %s9 = scalar_lea.sflag [#allocation5], 1
    %10 = vsyncpa %s9, 0
    %11 = vsyncpa [#allocation7], 0
    %12 = vsyncpa [#allocation6], 0
    %s13 = scalar_lea.sflag [#allocation6], 1
    %14 = vsyncpa %s13, 0
    loop: start=0, step=1, limit=4
    $region2: #{tpu_custom_call.1} parent=1 // loop_pre_header
      _
    $region3: #{tpu_custom_call.1} parent=1 // loop_header
      %s16 = sphi 0, %s20
      %p17 = scmp.ge.s32.totalorder %s16, 4
      %s26 = sphi 0, %s28
      %s29 = sphi 0, %s26
      %s30 = sphi 0, %s29
      %s46 = sphi 0, %s30
      %s50 = sphi 0, %s50
      %s52 = sphi 0, %s50
      %s53 = sphi 0, %s52
      %s67 = sphi 0, %s53
      %s71 = sphi 0, %s71
      %s73 = sphi 0, %s71
      %s74 = sphi 0, %s73
      %s88 = sphi 0, %s74
      %s94 = sphi 0, %s96
      %s97 = sphi 0, %s94
      %s98 = sphi 0, %s97
      %s114 = sphi 0, %s98
    $region4: #{tpu_custom_call.1} parent=1 // loop_header_branch
      %19 = sbr.rel (%p17) target = $region8
    $region5: #{tpu_custom_call.1} parent=1 // loop_body
      %s21 = ssub.s32 %s16, 1
      %s22 = ssub.s32 %s16, 2
      %s23 = sadd.s32 %s16, 1
      %s24 = ssub.s32 %s16, %s23
      %p25 = scmp.eq.s32.totalorder %s24, 0
      %s27 = sadd.s32 %s26, 1
      %s28 = scalar_select %p25, %s26, %s27
      %p31 = pneg %p25
      %p32 = scmp.eq.s32.totalorder %s16, 1
      %p33 = por %p31, %p32
      %p34 = scmp.ne.s32.totalorder %s26, %s29
      %p35 = scmp.eq.s32.totalorder %s16, 0
      %p36 = por %p34, %p35
      %p37 = scmp.ne.s32.totalorder %s26, %s29
      %p38 = scmp.eq.s32.totalorder %s21, 1
      %p39 = por %p37, %p38
      %p40 = scmp.ne.s32.totalorder %s29, %s30
      %p41 = scmp.eq.s32.totalorder %s21, 0
      %p42 = por %p40, %p41
      %p43 = scmp.ne.s32.totalorder %s29, %s30
      %p44 = scmp.eq.s32.totalorder %s22, 1
      %p45 = por %p43, %p44
      %p47 = scmp.ne.s32.totalorder %s30, %s46
      %p48 = scmp.eq.s32.totalorder %s22, 0
      %p49 = por %p47, %p48
      %s51 = sadd.s32 %s50, 1
      %p54 = scmp.eq.s32.totalorder %s16, 1
      %p55 = scmp.ne.s32.totalorder %s50, %s52
      %p56 = scmp.eq.s32.totalorder %s16, 0
      %p57 = por %p55, %p56
      %p58 = scmp.ne.s32.totalorder %s50, %s52
      %p59 = scmp.eq.s32.totalorder %s21, 1
      %p60 = por %p58, %p59
      %p61 = scmp.ne.s32.totalorder %s52, %s53
      %p62 = scmp.eq.s32.totalorder %s21, 0
      %p63 = por %p61, %p62
      %p64 = scmp.ne.s32.totalorder %s52, %s53
      %p65 = scmp.eq.s32.totalorder %s22, 1
      %p66 = por %p64, %p65
      %p68 = scmp.ne.s32.totalorder %s53, %s67
      %p69 = scmp.eq.s32.totalorder %s22, 0
      %p70 = por %p68, %p69
      %s72 = sadd.s32 %s71, 1
      %p75 = scmp.eq.s32.totalorder %s16, 1
      %p76 = scmp.ne.s32.totalorder %s71, %s73
      %p77 = scmp.eq.s32.totalorder %s16, 0
      %p78 = por %p76, %p77
      %p79 = scmp.ne.s32.totalorder %s71, %s73
      %p80 = scmp.eq.s32.totalorder %s21, 1
      %p81 = por %p79, %p80
      %p82 = scmp.ne.s32.totalorder %s73, %s74
      %p83 = scmp.eq.s32.totalorder %s21, 0
      %p84 = por %p82, %p83
      %p85 = scmp.ne.s32.totalorder %s73, %s74
      %p86 = scmp.eq.s32.totalorder %s22, 1
      %p87 = por %p85, %p86
      %p89 = scmp.ne.s32.totalorder %s74, %s88
      %p90 = scmp.eq.s32.totalorder %s22, 0
      %p91 = por %p89, %p90
      %s92 = ssub.s32 %s16, %s23
      %p93 = scmp.eq.s32.totalorder %s92, 0
      %s95 = sadd.s32 %s94, 1
      %s96 = scalar_select %p93, %s94, %s95
      %p99 = pneg %p93
      %p100 = scmp.eq.s32.totalorder %s16, 1
      %p101 = por %p99, %p100
      %p102 = scmp.ne.s32.totalorder %s94, %s97
      %p103 = scmp.eq.s32.totalorder %s16, 0
      %p104 = por %p102, %p103
      %p105 = scmp.ne.s32.totalorder %s94, %s97
      %p106 = scmp.eq.s32.totalorder %s21, 1
      %p107 = por %p105, %p106
      %p108 = scmp.ne.s32.totalorder %s97, %s98
      %p109 = scmp.eq.s32.totalorder %s21, 0
      %p110 = por %p108, %p109
      %p111 = scmp.ne.s32.totalorder %s97, %s98
      %p112 = scmp.eq.s32.totalorder %s22, 1
      %p113 = por %p111, %p112
      %p115 = scmp.ne.s32.totalorder %s98, %s114
      %p116 = scmp.eq.s32.totalorder %s22, 0
      %p117 = por %p115, %p116
      %p118 = scmp.le.s32.totalorder 1, %s16
      %p119 = scmp.lt.s32.totalorder %s16, 3
      %p120 = pnand %p118, %p119
      %p121 = pneg %p120
      // Predicated region
      $region9: #{tpu_custom_call.1} parent=5 // pred_check
        _
      $region10: #{tpu_custom_call.1} parent=5 // pred_check_branch
        %123 = sbr.rel (%p120) target = $region12
      $region11: #{tpu_custom_call.1} parent=5 // pred_region
        %s124 = ssub.s32 %s16, 1
        // Predicated region
        $region13: #{tpu_custom_call.1} parent=11 // pred_check
          %p125 = pneg %p63
        $region14: #{tpu_custom_call.1} parent=11 // pred_check_branch
          %127 = sbr.rel (%p125) target = $region16
        $region15: #{tpu_custom_call.1} parent=11 // pred_region
          %s129 = ssub.s32 16, 16
          %130 = vsyncadd [#allocation7], %s129
          %s132 = sshll.u32 %s1, 4
          %s133 = int_to_ptr.vmem [resolvable:$true] %s132
          %135 = dma.vmem_to_smem %s133, 16, [#allocation8], [#allocation7]
        $region16: #{tpu_custom_call.1} parent=11 // pred_fallthru
          _
        // Predicated region
        $region17: #{tpu_custom_call.1} parent=11 // pred_check
          %p136 = pneg %p84
        $region18: #{tpu_custom_call.1} parent=11 // pred_check_branch
          %138 = sbr.rel (%p136) target = $region20
        $region19: #{tpu_custom_call.1} parent=11 // pred_region
          _
        $region20: #{tpu_custom_call.1} parent=11 // pred_fallthru
          _
      $region12: #{tpu_custom_call.1} parent=5 // pred_fallthru
        _
      %p139 = scmp.lt.s32.totalorder %s16, 2
      // Predicated region
      $region21: #{tpu_custom_call.1} parent=5 // pred_check
        %p140 = pneg %p139
      $region22: #{tpu_custom_call.1} parent=5 // pred_check_branch
        %142 = sbr.rel (%p140) target = $region24
      $region23: #{tpu_custom_call.1} parent=5 // pred_region
        // Predicated region
        $region25: #{tpu_custom_call.1} parent=23 // pred_check
          %p143 = pneg %p36
        $region26: #{tpu_custom_call.1} parent=23 // pred_check_branch
          %145 = sbr.rel (%p143) target = $region28
        $region27: #{tpu_custom_call.1} parent=23 // pred_region
          %s146 = sand.u32 %s26, 1
          %s147 = scalar_lea.sflag [#allocation5], %s146
          %s148 = sand.u32 %s26, 1
          %s149 = smul.addr %s148, 8
          %s150 = scalar_lea.vmem [#allocation4], %s149
          %s152 = ssub.s32 128, 128
          %153 = vsyncadd %s147, %s152
          %s154 = smul.addr %s16, 2
          %s155 = smul.addr %s154, 64
          %s156 = scalar_lea.hbm %s0, %s155
          %s158 = sshll.u32 %s150, 4
          %s159 = int_to_ptr.vmem [resolvable:$true] %s158
          %161 = dma.hbm_to_vmem [thread:$0]  %s156, 128, %s159, %s147
        $region28: #{tpu_custom_call.1} parent=23 // pred_fallthru
          _
      $region24: #{tpu_custom_call.1} parent=5 // pred_fallthru
        _
      %p162 = scmp.le.s32.totalorder 1, %s16
      %p163 = scmp.lt.s32.totalorder %s16, 3
      %p164 = pnand %p162, %p163
      %p165 = pneg %p164
      // Predicated region
      $region29: #{tpu_custom_call.1} parent=5 // pred_check
        _
      $region30: #{tpu_custom_call.1} parent=5 // pred_check_branch
        %167 = sbr.rel (%p164) target = $region32
      $region31: #{tpu_custom_call.1} parent=5 // pred_region
        %s168 = ssub.s32 %s16, 1
        %s169 = sand.u32 %s29, 1
        %s170 = scalar_lea.sflag [#allocation5], %s169
        %s171 = sand.u32 %s29, 1
        %s172 = smul.addr %s171, 8
        %s173 = scalar_lea.vmem [#allocation4], %s172
        // Predicated region
        $region33: #{tpu_custom_call.1} parent=31 // pred_check
          %p174 = pneg %p42
        $region34: #{tpu_custom_call.1} parent=31 // pred_check_branch
          %176 = sbr.rel (%p174) target = $region36
        $region35: #{tpu_custom_call.1} parent=31 // pred_region
          %177 = dma.done %s170, 128
        $region36: #{tpu_custom_call.1} parent=31 // pred_fallthru
          _
        // Predicated region
        $region37: #{tpu_custom_call.1} parent=31 // pred_check
          %p178 = pneg %p63
        $region38: #{tpu_custom_call.1} parent=31 // pred_check_branch
          %180 = sbr.rel (%p178) target = $region40
        $region39: #{tpu_custom_call.1} parent=31 // pred_region
          %181 = dma.done [#allocation7], 16
        $region40: #{tpu_custom_call.1} parent=31 // pred_fallthru
          _
        %182 = sfence
        %s183 = sand.u32 %s29, 1
        %s184 = scalar_lea.sflag [#allocation5], %s183
        %s185 = sand.u32 %s29, 1
        %s186 = smul.addr %s185, 8
        %s187 = scalar_lea.vmem [#allocation4], %s186
        %p188 = pneg %p42
        %p189 = pneg %p39
        %p190 = pneg %p63
        %p191 = pneg %p60
        %p192 = pneg %p84
        %p193 = pneg %p81
        %p194 = pneg %p110
        %p195 = pneg %p107
        %s196 = sand.u32 %s97, 1
        %s197 = scalar_lea.sflag [#allocation6], %s196
        %s198 = sand.u32 %s97, 1
        %s199 = smul.addr %s198, 8
        %s200 = scalar_lea.vmem [#allocation9], %s199
        %v201 = vld [vmem:[%s173] sm:$0xff]
        %v203 = vcombine.high %v201, %v201
        %vm205 = vcmask 1043456
        %v206 = vsel %vm205, %v201, 0.0
        %v207 = vrot.slane %v206, 4
        %v208 = vadd.f32 %v206, %v207
        %v209 = vrot.slane %v208, 2
        %v210 = vadd.f32 %v208, %v209
        %v211 = vrot.slane %v210, 1
        %v212 = vadd.f32 %v210, %v211
        %v213 = vsel %vm205, %v203, 0.0
        %v214 = vrot.slane %v213, 4
        %v215 = vadd.f32 %v213, %v214
        %v216 = vrot.slane %v215, 2
        %v217 = vadd.f32 %v215, %v216
        %v218 = vrot.slane %v217, 1
        %v219 = vadd.f32 %v217, %v218
        %v220 = vmul.f32 %v212, 0.25
        %v221 = vmul.f32 %v219, 0.25
        %v222 = vsel %vm205, %v201, -inf
        %v223 = vrot.slane %v222, 4
        %v224 = vmax.f32 %v222, %v223
        %v225 = vrot.slane %v224, 2
        %v226 = vmax.f32 %v224, %v225
        %v227 = vrot.slane %v226, 1
        %v228 = vmax.f32 %v226, %v227
        %v229 = vsel %vm205, %v203, -inf
        %v230 = vrot.slane %v229, 4
        %v231 = vmax.f32 %v229, %v230
        %v232 = vrot.slane %v231, 2
        %v233 = vmax.f32 %v231, %v232
        %v234 = vrot.slane %v233, 1
        %v235 = vmax.f32 %v233, %v234
        %v236 = vlaneseq
        %vm237 = vcmp.ge.s32.totalorder %v236, 0
        %vm238 = vcmp.lt.s32.totalorder %v236, 17
        %vm239 = vmand %vm237, %vm238
        %240 = vst.msk [vmem:[#allocation2] sm:$0x1] %vm239, 0.0
        %vm241 = vcmp.ge.s32.totalorder %v236, 17
        %vm242 = vcmp.lt.s32.totalorder %v236, 34
        %vm243 = vmand %vm241, %vm242
        %244 = vst.msk [vmem:[#allocation2 + $0x2] sm:$0x1] %vm243, 0.0
        %245 = vst.msk [vmem:[#allocation3] sm:$0x1] %vm239, 0.0
        %246 = vst.msk [vmem:[#allocation3 + $0x2] sm:$0x1] %vm243, 0.0
        %v249 = vcombine.low %v220, %v221
        %v251 = vunpack.c.l.s4 1966171168
        %v252 = vunpack.c.0.s8 %v251
        %v253 = vlaneseq
        %v254 = vshrl.u32 %v253, 7
        %v255 = vsub.s32 %v252, %v254
        %v256 = vrot.slane %v249, %v255
        %v258 = vunpack.c.l.s4 1966171168
        %v259 = vunpack.c.0.s8 %v258
        %v260 = vlaneseq
        %v261 = vshrl.u32 %v260, 7
        %v262 = vsub.s32 %v259, %v261
        %v263 = vrot.slane %v256, %v262
        %264 = vrot.lane.b32.xlu0 %v263, 17
        %v265 = vpop.permute.xlu0 %264
        %v266 = vrot.slane %v265, 7
        %vm267 = vcmask 138240
        %v268 = vsel %vm267, %v266, %v265
        %vm270 = vcmp.lt.s32.totalorder %v236, 273
        %vm271 = vmand %vm241, %vm270
        %272 = vst.msk [vmem:[#allocation2] sm:$0x7] %vm271, %v268
        %v275 = vcombine.low %v228, %v235
        %v277 = vunpack.c.l.s4 1966171168
        %v278 = vunpack.c.0.s8 %v277
        %v279 = vlaneseq
        %v280 = vshrl.u32 %v279, 7
        %v281 = vsub.s32 %v278, %v280
        %v282 = vrot.slane %v275, %v281
        %v284 = vunpack.c.l.s4 1966171168
        %v285 = vunpack.c.0.s8 %v284
        %v286 = vlaneseq
        %v287 = vshrl.u32 %v286, 7
        %v288 = vsub.s32 %v285, %v287
        %v289 = vrot.slane %v282, %v288
        %290 = vrot.lane.b32.xlu0 %v289, 17
        %v291 = vpop.permute.xlu0 %290
        %v292 = vrot.slane %v291, 7
        %v293 = vsel %vm267, %v292, %v291
        %295 = vst.msk [vmem:[#allocation3] sm:$0x7] %vm271, %v293
        %v296 = vld [vmem:[%s2] sm:$0x3]
        %s297 = scalar_lea.vmem %s2, 2
        %v298 = vld [vmem:[%s297] sm:$0x3]
        %s299 = sld [smem:[#allocation8]]
        %s300 = sld [smem:[#allocation8 + $0x9]]
        %v301 = vld [vmem:[#allocation2] sm:$0x3]
        %v302 = vstv %s299
        %v303 = vmul.f32 %v302, %v301
        %v304 = vadd.f32 %v303, 0.0
        %v305 = vld [vmem:[#allocation3] sm:$0x3]
        %v306 = vstv %s300
        %v307 = vmul.f32 %v306, %v305
        %v308 = vadd.f32 %v304, %v307
        %s309 = sld [smem:[#allocation8 + $0x3]]
        %s310 = sld [smem:[#allocation8 + $0xc]]
        %v311 = vld [vmem:[#allocation2] sm:$0x7]
        %v312 = vstv %s309
        %v313 = vmul.f32 %v312, %v311
        %315 = vrot.lane.b32.xlu0 %v313, 112
        %v316 = vpop.permute.xlu0 %315
        %v317 = vrot.slane %v316, 1
        %vm318 = vcmask 916480
        %v319 = vsel %vm318, %v316, %v317
        %v321 = vadd.f32 %v308, %v319
        %v322 = vld [vmem:[#allocation3] sm:$0x7]
        %v323 = vstv %s310
        %v324 = vmul.f32 %v323, %v322
        %326 = vrot.lane.b32.xlu0 %v324, 112
        %v327 = vpop.permute.xlu0 %326
        %v328 = vrot.slane %v327, 1
        %v329 = vsel %vm318, %v327, %v328
        %v331 = vadd.f32 %v321, %v329
        %s332 = sld [smem:[#allocation8 + $0x6]]
        %s333 = sld [smem:[#allocation8 + $0xf]]
        %v334 = vstv %s332
        %v335 = vmul.f32 %v334, %v311
        %337 = vrot.lane.b32.xlu0 %v335, 96
        %v338 = vpop.permute.xlu0 %337
        %v339 = vrot.slane %v338, 1
        %vm340 = vcmask 785408
        %v341 = vsel %vm340, %v338, %v339
        %v343 = vadd.f32 %v331, %v341
        %v344 = vstv %s333
        %v345 = vmul.f32 %v344, %v322
        %347 = vrot.lane.b32.xlu0 %v345, 96
        %v348 = vpop.permute.xlu0 %347
        %v349 = vrot.slane %v348, 1
        %v350 = vsel %vm340, %v348, %v349
        %v352 = vadd.f32 %v343, %v350
        %v353 = vmul.f32 %v352, %v296
        %v354 = vadd.f32 %v353, 0.0
        %s355 = sld [smem:[#allocation8 + $0x1]]
        %s356 = sld [smem:[#allocation8 + $0xa]]
        %v357 = vstv %s355
        %v358 = vmul.f32 %v357, %v311
        %v359 = vadd.f32 %v358, 0.0
        %v360 = vstv %s356
        %v361 = vmul.f32 %v360, %v322
        %v362 = vadd.f32 %v359, %v361
        %s363 = sld [smem:[#allocation8 + $0x4]]
        %s364 = sld [smem:[#allocation8 + $0xd]]
        %v365 = vstv %s363
        %v366 = vmul.f32 %v365, %v311
        %368 = vrot.lane.b32.xlu0 %v366, 112
        %v369 = vpop.permute.xlu0 %368
        %v370 = vrot.slane %v369, 1
        %v371 = vsel %vm318, %v369, %v370
        %v373 = vadd.f32 %v362, %v371
        %v374 = vstv %s364
        %v375 = vmul.f32 %v374, %v322
        %377 = vrot.lane.b32.xlu0 %v375, 112
        %v378 = vpop.permute.xlu0 %377
        %v379 = vrot.slane %v378, 1
        %v380 = vsel %vm318, %v378, %v379
        %v382 = vadd.f32 %v373, %v380
        %s383 = sld [smem:[#allocation8 + $0x7]]
        %s384 = sld [smem:[#allocation8 + $0x10]]
        %v385 = vstv %s383
        %v386 = vmul.f32 %v385, %v311
        %388 = vrot.lane.b32.xlu0 %v386, 96
        %v389 = vpop.permute.xlu0 %388
        %v390 = vrot.slane %v389, 1
        %v391 = vsel %vm340, %v389, %v390
        %v393 = vadd.f32 %v382, %v391
        %v394 = vstv %s384
        %v395 = vmul.f32 %v394, %v322
        %397 = vrot.lane.b32.xlu0 %v395, 96
        %v398 = vpop.permute.xlu0 %397
        %v399 = vrot.slane %v398, 1
        %v400 = vsel %vm340, %v398, %v399
        %v402 = vadd.f32 %v393, %v400
        %404 = vrot.lane.b32.xlu0 %v402, 127
        %v405 = vpop.permute.xlu0 %404
        %v406 = vrot.slane %v405, 1
        %vm407 = vcmask 1039360
        %v408 = vsel %vm407, %v405, %v406
        %v410 = vadd.f32 %v354, %v408
        %s411 = sld [smem:[#allocation8 + $0x2]]
        %s412 = sld [smem:[#allocation8 + $0xb]]
        %v413 = vstv %s411
        %v414 = vmul.f32 %v413, %v311
        %v415 = vadd.f32 %v414, 0.0
        %v416 = vstv %s412
        %v417 = vmul.f32 %v416, %v322
        %v418 = vadd.f32 %v415, %v417
        %s419 = sld [smem:[#allocation8 + $0x5]]
        %s420 = sld [smem:[#allocation8 + $0xe]]
        %v421 = vstv %s419
        %v422 = vmul.f32 %v421, %v311
        %424 = vrot.lane.b32.xlu0 %v422, 112
        %v425 = vpop.permute.xlu0 %424
        %v426 = vrot.slane %v425, 1
        %v427 = vsel %vm318, %v425, %v426
        %v429 = vadd.f32 %v418, %v427
        %v430 = vstv %s420
        %v431 = vmul.f32 %v430, %v322
        %433 = vrot.lane.b32.xlu0 %v431, 112
        %v434 = vpop.permute.xlu0 %433
        %v435 = vrot.slane %v434, 1
        %v436 = vsel %vm318, %v434, %v435
        %v438 = vadd.f32 %v429, %v436
        %s439 = sld [smem:[#allocation8 + $0x8]]
        %s440 = sld [smem:[#allocation8 + $0x11]]
        %v441 = vstv %s439
        %v442 = vmul.f32 %v441, %v311
        %444 = vrot.lane.b32.xlu0 %v442, 96
        %v445 = vpop.permute.xlu0 %444
        %v446 = vrot.slane %v445, 1
        %v447 = vsel %vm340, %v445, %v446
        %v449 = vadd.f32 %v438, %v447
        %v450 = vstv %s440
        %v451 = vmul.f32 %v450, %v322
        %453 = vrot.lane.b32.xlu0 %v451, 96
        %v454 = vpop.permute.xlu0 %453
        %v455 = vrot.slane %v454, 1
        %v456 = vsel %vm340, %v454, %v455
        %v458 = vadd.f32 %v449, %v456
        %460 = vrot.lane.b32.xlu0 %v298, 2
        %v461 = vpop.permute.xlu0 %460
        %v462 = vrot.slane %v461, 7
        %vm463 = vcmask 15360
        %v464 = vsel %vm463, %v462, %v461
        %v466 = vmul.f32 %v458, %v464
        %468 = vrot.lane.b32.xlu0 %v466, 126
        %v469 = vpop.permute.xlu0 %468
        %v470 = vrot.slane %v469, 1
        %vm471 = vcmask 1031168
        %v472 = vsel %vm471, %v469, %v470
        %v474 = vadd.f32 %v410, %v472
        %v475 = vxor.u32 %v474, 2147483648
        %v476 = vmul.f32 %v475, 1.442695
        %v477 = vpow.pop %v476
        %v478 = vadd.f32 %v477, 1.0
        %v479 = vrcp.pop %v478
        %v480 = vmul.f32 1.0, %v479
        %v481 = vld [vmem:[%s173] sm:$0xff]
        %v483 = vlaneseq
        %v484 = vshrl.u32 %v483, 7
        %v485 = vsub.s32 0, %v484
        %v486 = vrot.slane %v480, %v485
        %v487 = vlaneseq
        %v488 = vshrl.u32 %v487, 7
        %v489 = vsub.s32 1, %v488
        %v490 = vrot.slane %v480, %v489
        %v491 = vcombine.low %v486, %v490
        %v493 = vmul.f32 %v481, %v491
        %494 = vst [vmem:[%s200] sm:$0xff] %v493
        %s495 = sand.u32 %s97, 1
        %s496 = scalar_lea.sflag [#allocation6], %s495
        %s497 = sand.u32 %s97, 1
        %s498 = smul.addr %s497, 8
        %s499 = scalar_lea.vmem [#allocation9], %s498
        // Predicated region
        $region41: #{tpu_custom_call.1} parent=31 // pred_check
          %p500 = pneg %p107
        $region42: #{tpu_custom_call.1} parent=31 // pred_check_branch
          %502 = sbr.rel (%p500) target = $region44
        $region43: #{tpu_custom_call.1} parent=31 // pred_region
          %s504 = ssub.s32 128, 128
          %505 = vsyncadd %s496, %s504
          %s506 = smul.addr %s21, 2
          %s507 = smul.addr %s506, 64
          %s508 = scalar_lea.hbm %s3, %s507
          %s510 = sshll.u32 %s499, 4
          %s511 = int_to_ptr.vmem [resolvable:$true] %s510
          %513 = dma.vmem_to_hbm [thread:$0]  %s511, 128, %s508, %s496
        $region44: #{tpu_custom_call.1} parent=31 // pred_fallthru
          _
      $region32: #{tpu_custom_call.1} parent=5 // pred_fallthru
        _
      %p514 = scmp.le.s32.totalorder 2, %s16
      // Predicated region
      $region45: #{tpu_custom_call.1} parent=5 // pred_check
        %p515 = pneg %p514
      $region46: #{tpu_custom_call.1} parent=5 // pred_check_branch
        %517 = sbr.rel (%p515) target = $region48
      $region47: #{tpu_custom_call.1} parent=5 // pred_region
        %s518 = ssub.s32 %s16, 2
        // Predicated region
        $region49: #{tpu_custom_call.1} parent=47 // pred_check
          %p519 = pneg %p113
        $region50: #{tpu_custom_call.1} parent=47 // pred_check_branch
          %521 = sbr.rel (%p519) target = $region52
        $region51: #{tpu_custom_call.1} parent=47 // pred_region
          %s522 = sand.u32 %s98, 1
          %s523 = scalar_lea.sflag [#allocation6], %s522
          %s524 = sand.u32 %s98, 1
          %s525 = smul.addr %s524, 8
          %s526 = scalar_lea.vmem [#allocation9], %s525
          %527 = dma.done %s523, 128
        $region52: #{tpu_custom_call.1} parent=47 // pred_fallthru
          _
      $region48: #{tpu_custom_call.1} parent=5 // pred_fallthru
        _
    $region6: #{tpu_custom_call.1} parent=1 // loop_footer
      %s20 = sadd.s32 1, %s16
    $region7: #{tpu_custom_call.1} parent=1 // loop_footer_branch
      %15 = sbr.rel target = $region3
    $region8: #{tpu_custom_call.1} parent=1 // loop_exit
      _
    %528 = vsyncpa [#allocation5], 1
    %s529 = scalar_lea.sflag [#allocation5], 1
    %530 = vsyncpa %s529, 1
    %531 = vsyncpa [#allocation6], 1
    %s532 = scalar_lea.sflag [#allocation6], 1
    %533 = vsyncpa %s532, 1
    %534 = vsyncpa [#allocation7], 1
    %s535 = scalar_lea.sflag [#allocation7], 1
    %536 = vsyncpa %s535, 1

</llo_original>
